<compile_context>
chip_gen: v7x
topology: tpu7x:2x2x1
jax: 0.10.0
libtpu: 0.0.40
codegen_flags: <defaults>
</compile_context>

<pallas_src>
import functools

import jax
import jax.numpy as jnp
from jax.experimental import pallas as pl
from jax.experimental.pallas import tpu as pltpu

LANES = 128
MAX_TILE_ROWS = 2048   # (2048, 128) f32 = 1 MiB per input per grid step
NUM_CORE_SPLITS = 2    # leading "parallel" axis -> both v7x TensorCores


def _iou_kernel(x_ref, t_ref, inter_ref, total_ref, *,
                n_valid, block_rows, tiles_per_core):
    c = pl.program_id(0)   # core split (parallel)
    i = pl.program_id(1)   # row-tile within this split (arbitrary / reduction)

    @pl.when(i == 0)
    def _():
        inter_ref[...] = jnp.zeros_like(inter_ref)
        total_ref[...] = jnp.zeros_like(total_ref)

    # Global element index for every slot of this tile, computed from the
    # *unclamped* tile index.  Any slot this tile is not responsible for
    # (ragged tail garbage, <128 wrapper pad, or a duplicated clamped tile)
    # gets masked to contribute exactly zero.  int32 is fine for < 2**31 elems.
    row0 = (c * tiles_per_core + i) * block_rows
    row = row0 + jax.lax.broadcasted_iota(jnp.int32, (block_rows, LANES), 0)
    lane = jax.lax.broadcasted_iota(jnp.int32, (block_rows, LANES), 1)
    valid = (row * LANES + lane) < n_valid

    x = jnp.where(valid, x_ref[...].astype(jnp.float32), 0.0)
    t = jnp.where(valid, t_ref[...].astype(jnp.float32), 0.0)
    s = jnp.where(valid, jax.nn.sigmoid(x), 0.0)

    # Sublane-only fold to a lane-wide partial; the cross-lane reduce happens
    # once, in the wrapper.  Fully hidden under the input DMAs.
    inter_ref[...] += jnp.sum(s * t, axis=0).reshape(1, 1, LANES)
    total_ref[...] += jnp.sum(s + t, axis=0).reshape(1, 1, LANES)


def iou_loss(inputs, targets, smooth=1.0):
    """IoU loss matching the PyTorch IoULoss.forward semantics."""
    x = inputs.reshape(-1)
    t = targets.reshape(-1)
    n = x.shape[0]

    # Lane-dense (rows, 128) slab.  Only when n is not a multiple of 128 do we
    # pad the (<128-element) tail — typical NCHW activations never hit this.
    rem = n % LANES
    if rem:
        pad = LANES - rem
        x = jnp.pad(x, (0, pad))
        t = jnp.pad(t, (0, pad))
    rows = x.shape[0] // LANES
    x2 = x.reshape(rows, LANES)
    t2 = t.reshape(rows, LANES)

    # Block rows: as large as possible (multiple of 8, or the full row count
    # when the array is small).  2048 rows f32 => 4 MiB double-buffered for the
    # two inputs, comfortably under every generation's scoped-VMEM default.
    block_rows = min(MAX_TILE_ROWS, rows)
    num_tiles = pl.cdiv(rows, block_rows)
    tiles_per_core = pl.cdiv(num_tiles, NUM_CORE_SPLITS)

    def in_index(c, i):
        # Clamp so the generated DMA never starts past the end of the array;
        # the in-kernel element mask zeroes anything a clamped/duplicated tile
        # is not responsible for.
        blk = jnp.minimum(c * tiles_per_core + i, num_tiles - 1)
        return (blk, 0)

    kernel = functools.partial(
        _iou_kernel,
        n_valid=n,
        block_rows=block_rows,
        tiles_per_core=tiles_per_core,
    )

    inter, total = pl.pallas_call(
        kernel,
        out_shape=(
            jax.ShapeDtypeStruct((NUM_CORE_SPLITS, 1, LANES), jnp.float32),
            jax.ShapeDtypeStruct((NUM_CORE_SPLITS, 1, LANES), jnp.float32),
        ),
        grid_spec=pltpu.PrefetchScalarGridSpec(
            num_scalar_prefetch=0,
            grid=(NUM_CORE_SPLITS, tiles_per_core),
            in_specs=[
                pl.BlockSpec((block_rows, LANES), in_index),
                pl.BlockSpec((block_rows, LANES), in_index),
            ],
            out_specs=(
                pl.BlockSpec((1, 1, LANES), lambda c, i: (c, 0, 0)),
                pl.BlockSpec((1, 1, LANES), lambda c, i: (c, 0, 0)),
            ),
        ),
        compiler_params=pltpu.CompilerParams(
            dimension_semantics=("parallel", "arbitrary"),
        ),
    )(x2, t2)

    intersection = jnp.sum(inter)
    total_sum = jnp.sum(total)
    union = total_sum - intersection
    smooth = jnp.float32(smooth)
    return jnp.float32(1.0) - (intersection + smooth) / (union + smooth)


def iou_loss_ref(inputs, targets, smooth=1.0):
    s = jax.nn.sigmoid(inputs.astype(jnp.float32)).reshape(-1)
    t = targets.astype(jnp.float32).reshape(-1)
    intersection = jnp.sum(s * t)
    total = jnp.sum(s + t)
    union = total - intersection
    return 1.0 - (intersection + smooth) / (union + smooth)


if __name__ == "__main__":
    key = jax.random.PRNGKey(0)
    k1, k2 = jax.random.split(key)
    # NCHW logits + binary targets, as the UNet training loop would provide.
    inputs = jax.random.normal(k1, (2, 4, 16, 16), dtype=jnp.float32)
    targets = (jax.random.uniform(k2, (2, 4, 16, 16)) > 0.5).astype(jnp.float32)

    loss = jax.block_until_ready(iou_loss(inputs, targets, smooth=1.0))
    ref = jax.block_until_ready(iou_loss_ref(inputs, targets, smooth=1.0))

    assert jnp.allclose(loss, ref, rtol=1e-5, atol=1e-5), (loss, ref)
    print("KERNEL_OK")
</pallas_src>

<mosaic_0001>
module attributes {stable_mosaic.version = 11 : i64} {
  func.func @_iou_kernel(%arg0: i32, %arg1: i32, %arg2: memref<16x128xf32, #tpu.memory_space<vmem>>, %arg3: memref<16x128xf32, #tpu.memory_space<vmem>>, %arg4: memref<1x1x128xf32, #tpu.memory_space<vmem>>, %arg5: memref<1x1x128xf32, #tpu.memory_space<vmem>>) attributes {dimension_semantics = [#tpu.dimension_semantics<parallel>, #tpu.dimension_semantics<arbitrary>], iteration_bounds = array<i64: 2, 1>, scalar_prefetch = 0 : i64, scratch_operands = 0 : i64, tpu.core_type = #tpu.core_type<tc>, window_params = [{transform_indices = @transform_0, window_bounds = array<i64: 16, 128>}, {transform_indices = @transform_1, window_bounds = array<i64: 16, 128>}, {transform_indices = @transform_2, window_bounds = array<i64: 1, 1, 128>}, {transform_indices = @transform_3, window_bounds = array<i64: 1, 1, 128>}]} {
    %c0_i32 = arith.constant 0 : i32
    %0 = arith.cmpi eq, %arg1, %c0_i32 : i32
    %1 = arith.extui %0 : i1 to i32
    %c0_i32_0 = arith.constant 0 : i32
    %2 = arith.cmpi ne, %1, %c0_i32_0 : i32
    scf.if %2 {
      %cst_21 = arith.constant 0.000000e+00 : f32
      %40 = vector.broadcast %cst_21 : f32 to vector<1x1x128xf32>
      %c0_22 = arith.constant 0 : index
      %c0_23 = arith.constant 0 : index
      %c0_24 = arith.constant 0 : index
      %41 = vector.load %arg4[%c0_22, %c0_23, %c0_24] : memref<1x1x128xf32, #tpu.memory_space<vmem>>, vector<1x1x128xf32>
      tpu.vector_store %arg4[%c0_22, %c0_23, %c0_24], %40 {strides = array<i32>} : memref<1x1x128xf32, #tpu.memory_space<vmem>>, vector<1x1x128xf32>,
      %cst_25 = arith.constant 0.000000e+00 : f32
      %42 = vector.broadcast %cst_25 : f32 to vector<1x1x128xf32>
      %c0_26 = arith.constant 0 : index
      %c0_27 = arith.constant 0 : index
      %c0_28 = arith.constant 0 : index
      %43 = vector.load %arg5[%c0_26, %c0_27, %c0_28] : memref<1x1x128xf32, #tpu.memory_space<vmem>>, vector<1x1x128xf32>
      tpu.vector_store %arg5[%c0_26, %c0_27, %c0_28], %42 {strides = array<i32>} : memref<1x1x128xf32, #tpu.memory_space<vmem>>, vector<1x1x128xf32>,
    } else {
    }
    %c1_i32 = arith.constant 1 : i32
    %3 = arith.muli %arg0, %c1_i32 : i32
    %4 = arith.addi %3, %arg1 : i32
    %c16_i32 = arith.constant 16 : i32
    %5 = arith.muli %4, %c16_i32 : i32
    %6 = tpu.iota {dimensions = array<i32: 0>} : vector<16x128xi32>
    %7 = vector.broadcast %5 : i32 to vector<16x128xi32>
    %8 = arith.addi %7, %6 : vector<16x128xi32>
    %9 = tpu.iota {dimensions = array<i32: 1>} : vector<16x128xi32>
    %c128_i32 = arith.constant 128 : i32
    %10 = vector.broadcast %c128_i32 : i32 to vector<16x128xi32>
    %11 = arith.muli %8, %10 : vector<16x128xi32>
    %12 = arith.addi %11, %9 : vector<16x128xi32>
    %c2048_i32 = arith.constant 2048 : i32
    %13 = vector.broadcast %c2048_i32 : i32 to vector<16x128xi32>
    %14 = arith.cmpi slt, %12, %13 : vector<16x128xi32>
    %c0 = arith.constant 0 : index
    %c0_1 = arith.constant 0 : index
    %15 = vector.load %arg2[%c0, %c0_1] : memref<16x128xf32, #tpu.memory_space<vmem>>, vector<16x128xf32>
    %cst = arith.constant 0.000000e+00 : f32
    %16 = vector.broadcast %cst : f32 to vector<16x128xf32>
    %17 = arith.select %14, %15, %16 : vector<16x128xi1>, vector<16x128xf32>
    %c0_2 = arith.constant 0 : index
    %c0_3 = arith.constant 0 : index
    %18 = vector.load %arg3[%c0_2, %c0_3] : memref<16x128xf32, #tpu.memory_space<vmem>>, vector<16x128xf32>
    %cst_4 = arith.constant 0.000000e+00 : f32
    %19 = vector.broadcast %cst_4 : f32 to vector<16x128xf32>
    %20 = arith.select %14, %18, %19 : vector<16x128xi1>, vector<16x128xf32>
    %21 = arith.negf %17 : vector<16x128xf32>
    %22 = math.exp %21 : vector<16x128xf32>
    %cst_5 = arith.constant 1.000000e+00 : f32
    %23 = vector.broadcast %cst_5 : f32 to vector<16x128xf32>
    %24 = arith.addf %23, %22 : vector<16x128xf32>
    %25 = arith.divf %23, %24 : vector<16x128xf32>
    %cst_6 = arith.constant 0.000000e+00 : f32
    %26 = vector.broadcast %cst_6 : f32 to vector<16x128xf32>
    %27 = arith.select %14, %25, %26 : vector<16x128xi1>, vector<16x128xf32>
    %c0_7 = arith.constant 0 : index
    %c0_8 = arith.constant 0 : index
    %c0_9 = arith.constant 0 : index
    %28 = vector.load %arg4[%c0_7, %c0_8, %c0_9] : memref<1x1x128xf32, #tpu.memory_space<vmem>>, vector<1x1x128xf32>
    %29 = arith.mulf %27, %20 : vector<16x128xf32>
    %cst_10 = arith.constant dense<0.000000e+00> : vector<128xf32>
    %30 = vector.multi_reduction <add>, %29, %cst_10 [0] : vector<16x128xf32> to vector<128xf32>
    %31 = vector.shape_cast %30 : vector<128xf32> to vector<1x1x128xf32>
    %32 = arith.addf %28, %31 : vector<1x1x128xf32>
    %c0_11 = arith.constant 0 : index
    %c0_12 = arith.constant 0 : index
    %c0_13 = arith.constant 0 : index
    %33 = vector.load %arg4[%c0_11, %c0_12, %c0_13] : memref<1x1x128xf32, #tpu.memory_space<vmem>>, vector<1x1x128xf32>
    tpu.vector_store %arg4[%c0_11, %c0_12, %c0_13], %32 {strides = array<i32>} : memref<1x1x128xf32, #tpu.memory_space<vmem>>, vector<1x1x128xf32>,
    %c0_14 = arith.constant 0 : index
    %c0_15 = arith.constant 0 : index
    %c0_16 = arith.constant 0 : index
    %34 = vector.load %arg5[%c0_14, %c0_15, %c0_16] : memref<1x1x128xf32, #tpu.memory_space<vmem>>, vector<1x1x128xf32>
    %35 = arith.addf %27, %20 : vector<16x128xf32>
    %cst_17 = arith.constant dense<0.000000e+00> : vector<128xf32>
    %36 = vector.multi_reduction <add>, %35, %cst_17 [0] : vector<16x128xf32> to vector<128xf32>
    %37 = vector.shape_cast %36 : vector<128xf32> to vector<1x1x128xf32>
    %38 = arith.addf %34, %37 : vector<1x1x128xf32>
    %c0_18 = arith.constant 0 : index
    %c0_19 = arith.constant 0 : index
    %c0_20 = arith.constant 0 : index
    %39 = vector.load %arg5[%c0_18, %c0_19, %c0_20] : memref<1x1x128xf32, #tpu.memory_space<vmem>>, vector<1x1x128xf32>
    tpu.vector_store %arg5[%c0_18, %c0_19, %c0_20], %38 {strides = array<i32>} : memref<1x1x128xf32, #tpu.memory_space<vmem>>, vector<1x1x128xf32>,
    return
  }
  func.func @transform_0(%arg0: i32, %arg1: i32) -> (i32, i32) {
    %c1_i32 = arith.constant 1 : i32
    %0 = arith.muli %arg0, %c1_i32 : i32
    %1 = arith.addi %0, %arg1 : i32
    %c0_i32 = arith.constant 0 : i32
    %2 = arith.minsi %1, %c0_i32 : i32
    %c0_i32_0 = arith.constant 0 : i32
    %c0_i32_1 = arith.constant 0 : i32
    return %2, %c0_i32_0 : i32, i32
  }
  func.func @transform_1(%arg0: i32, %arg1: i32) -> (i32, i32) {
    %c1_i32 = arith.constant 1 : i32
    %0 = arith.muli %arg0, %c1_i32 : i32
    %1 = arith.addi %0, %arg1 : i32
    %c0_i32 = arith.constant 0 : i32
    %2 = arith.minsi %1, %c0_i32 : i32
    %c0_i32_0 = arith.constant 0 : i32
    %c0_i32_1 = arith.constant 0 : i32
    return %2, %c0_i32_0 : i32, i32
  }
  func.func @transform_2(%arg0: i32, %arg1: i32) -> (i32, i32, i32) {
    %c0_i32 = arith.constant 0 : i32
    %c0_i32_0 = arith.constant 0 : i32
    %c0_i32_1 = arith.constant 0 : i32
    return %arg0, %c0_i32, %c0_i32_0 : i32, i32, i32
  }
  func.func @transform_3(%arg0: i32, %arg1: i32) -> (i32, i32, i32) {
    %c0_i32 = arith.constant 0 : i32
    %c0_i32_0 = arith.constant 0 : i32
    %c0_i32_1 = arith.constant 0 : i32
    return %arg0, %c0_i32, %c0_i32_0 : i32, i32, i32
  }
}

</mosaic_0001>

<llo_original>
// kernel: tpu_custom_call.1
$region0: #{tpu_custom_call.1}
  #allocation0 [shape = 'u32[]', space=smem, size = 0x4, offset = 0x4, fixed_abs, tag = 'smem constant byte address 0x4 - core index']
  #allocation1 [shape = 'u32[144,128]{1,0:T(1,128)}', space=vmem, size = 0x12000, scoped, tag = 'internal scratch']
  %s0 = inlined_call_operand.hbm [shape: f32[16,128], index: 0, kind: input, shape index: {}]
  %s1 = inlined_call_operand.hbm [shape: f32[16,128], index: 1, kind: input, shape index: {}]
  %s2 = inlined_call_operand.hbm [shape: f32[2,1,128], index: 2, kind: output, shape index: {0}]
  %s3 = inlined_call_operand.hbm [shape: f32[2,1,128], index: 3, kind: output, shape index: {1}]
  %4 = xla_tuple %s2, %s3
  %s5 = sld [smem:[#allocation0]]
  $region61: #{tpu_custom_call.1} parent=0
    _
  %s7 = ssub.s32 1, %s5
  %s8 = scalar_select 0, %s7, %s5
  $region1: #{tpu_custom_call.1} parent=0
    #allocation2 [shape = 'u8[16384]{0}', space=vmem, size = 0x4000, scoped, tag = 'input window, operand 0']
    #allocation3 [shape = 's32[2]{0}', space=sflag, size = 0x8, scoped, tag = 'scoped memory for tpu_custom_call.1']
    #allocation4 [shape = 's32[2]{0}', space=sflag, size = 0x8, scoped, tag = 'scoped memory for tpu_custom_call.1']
    #allocation5 [shape = 'u8[16384]{0}', space=vmem, size = 0x4000, scoped, tag = 'input window, operand 1']
    #allocation6 [shape = 's32[2]{0}', space=sflag, size = 0x8, scoped, tag = 'scoped memory for tpu_custom_call.1']
    #allocation7 [shape = 'u8[1024]{0}', space=vmem, size = 0x400, scoped, tag = 'output window, operand 0']
    #allocation8 [shape = 'u8[1024]{0}', space=vmem, size = 0x400, scoped, tag = 'output window, operand 1']
    #allocation9 [shape = 's32[2]{0}', space=sflag, size = 0x8, scoped, tag = 'scoped memory for tpu_custom_call.1']
    %9 = vsyncpa [#allocation3], 0
    %s10 = scalar_lea.sflag [#allocation3], 1
    %11 = vsyncpa %s10, 0
    %12 = vsyncpa [#allocation6], 0
    %s13 = scalar_lea.sflag [#allocation6], 1
    %14 = vsyncpa %s13, 0
    %15 = vsyncpa [#allocation4], 0
    %s16 = scalar_lea.sflag [#allocation4], 1
    %17 = vsyncpa %s16, 0
    %18 = vsyncpa [#allocation9], 0
    %s19 = scalar_lea.sflag [#allocation9], 1
    %20 = vsyncpa %s19, 0
    loop: start=0, step=1, limit=4
    $region2: #{tpu_custom_call.1} parent=1 // loop_pre_header
      _
    $region3: #{tpu_custom_call.1} parent=1 // loop_header
      %s22 = sphi 0, %s26
      %p23 = scmp.ge.s32.totalorder %s22, 4
      %s29 = sphi 0, %s41
      %s30 = sphi 0, %s37
      %s31 = sphi 0, %s29
      %s32 = sphi 0, %s30
      %s33 = sphi 0, %s31
      %s34 = sphi 0, %s32
      %s50 = sphi 0, %s52
      %s53 = sphi 0, %s50
      %s54 = sphi 0, %s53
      %s70 = sphi 0, %s54
      %s82 = sphi 0, %s84
      %s85 = sphi 0, %s82
      %s86 = sphi 0, %s85
      %s102 = sphi 0, %s86
      %s108 = sphi 0, %s110
      %s111 = sphi 0, %s108
      %s112 = sphi 0, %s111
      %s128 = sphi 0, %s112
      %s134 = sphi 0, %s136
      %s137 = sphi 0, %s134
      %s138 = sphi 0, %s137
      %s154 = sphi 0, %s138
    $region4: #{tpu_custom_call.1} parent=1 // loop_header_branch
      %25 = sbr.rel (%p23) target = $region8
    $region5: #{tpu_custom_call.1} parent=1 // loop_body
      %s27 = ssub.s32 %s22, 1
      %s28 = ssub.s32 %s22, 2
      %s35 = sadd.s32 1, %s30
      %p36 = scmp.ge.s32.totalorder %s35, 1
      %s37 = scalar_select %p36, 0, %s35
      %s38 = sadd.s32 1, %s29
      %s39 = scalar_select %p36, %s38, %s29
      %p40 = scmp.ge.s32.totalorder %s39, 2
      %s41 = scalar_select %p40, 0, %s39
      %s42 = sadd.s32 %s29, %s30
      %p43 = scmp.lt.s32.totalorder %s42, 0
      %s44 = scalar_select %p43, %s42, 0
      %s45 = sadd.s32 %s41, %s37
      %p46 = scmp.lt.s32.totalorder %s45, 0
      %s47 = scalar_select %p46, %s45, 0
      %s48 = ssub.s32 %s44, %s47
      %p49 = scmp.eq.s32.totalorder %s48, 0
      %s51 = sadd.s32 %s50, 1
      %s52 = scalar_select %p49, %s50, %s51
      %p55 = pneg %p49
      %p56 = scmp.eq.s32.totalorder %s22, 1
      %p57 = por %p55, %p56
      %p58 = scmp.ne.s32.totalorder %s50, %s53
      %p59 = scmp.eq.s32.totalorder %s22, 0
      %p60 = por %p58, %p59
      %p61 = scmp.ne.s32.totalorder %s50, %s53
      %p62 = scmp.eq.s32.totalorder %s27, 1
      %p63 = por %p61, %p62
      %p64 = scmp.ne.s32.totalorder %s53, %s54
      %p65 = scmp.eq.s32.totalorder %s27, 0
      %p66 = por %p64, %p65
      %p67 = scmp.ne.s32.totalorder %s53, %s54
      %p68 = scmp.eq.s32.totalorder %s28, 1
      %p69 = por %p67, %p68
      %p71 = scmp.ne.s32.totalorder %s54, %s70
      %p72 = scmp.eq.s32.totalorder %s28, 0
      %p73 = por %p71, %p72
      %s74 = sadd.s32 %s29, %s30
      %p75 = scmp.lt.s32.totalorder %s74, 0
      %s76 = scalar_select %p75, %s74, 0
      %s77 = sadd.s32 %s41, %s37
      %p78 = scmp.lt.s32.totalorder %s77, 0
      %s79 = scalar_select %p78, %s77, 0
      %s80 = ssub.s32 %s76, %s79
      %p81 = scmp.eq.s32.totalorder %s80, 0
      %s83 = sadd.s32 %s82, 1
      %s84 = scalar_select %p81, %s82, %s83
      %p87 = pneg %p81
      %p88 = scmp.eq.s32.totalorder %s22, 1
      %p89 = por %p87, %p88
      %p90 = scmp.ne.s32.totalorder %s82, %s85
      %p91 = scmp.eq.s32.totalorder %s22, 0
      %p92 = por %p90, %p91
      %p93 = scmp.ne.s32.totalorder %s82, %s85
      %p94 = scmp.eq.s32.totalorder %s27, 1
      %p95 = por %p93, %p94
      %p96 = scmp.ne.s32.totalorder %s85, %s86
      %p97 = scmp.eq.s32.totalorder %s27, 0
      %p98 = por %p96, %p97
      %p99 = scmp.ne.s32.totalorder %s85, %s86
      %p100 = scmp.eq.s32.totalorder %s28, 1
      %p101 = por %p99, %p100
      %p103 = scmp.ne.s32.totalorder %s86, %s102
      %p104 = scmp.eq.s32.totalorder %s28, 0
      %p105 = por %p103, %p104
      %s106 = ssub.s32 %s29, %s41
      %p107 = scmp.eq.s32.totalorder %s106, 0
      %s109 = sadd.s32 %s108, 1
      %s110 = scalar_select %p107, %s108, %s109
      %p113 = pneg %p107
      %p114 = scmp.eq.s32.totalorder %s22, 1
      %p115 = por %p113, %p114
      %p116 = scmp.ne.s32.totalorder %s108, %s111
      %p117 = scmp.eq.s32.totalorder %s22, 0
      %p118 = por %p116, %p117
      %p119 = scmp.ne.s32.totalorder %s108, %s111
      %p120 = scmp.eq.s32.totalorder %s27, 1
      %p121 = por %p119, %p120
      %p122 = scmp.ne.s32.totalorder %s111, %s112
      %p123 = scmp.eq.s32.totalorder %s27, 0
      %p124 = por %p122, %p123
      %p125 = scmp.ne.s32.totalorder %s111, %s112
      %p126 = scmp.eq.s32.totalorder %s28, 1
      %p127 = por %p125, %p126
      %p129 = scmp.ne.s32.totalorder %s112, %s128
      %p130 = scmp.eq.s32.totalorder %s28, 0
      %p131 = por %p129, %p130
      %s132 = ssub.s32 %s29, %s41
      %p133 = scmp.eq.s32.totalorder %s132, 0
      %s135 = sadd.s32 %s134, 1
      %s136 = scalar_select %p133, %s134, %s135
      %p139 = pneg %p133
      %p140 = scmp.eq.s32.totalorder %s22, 1
      %p141 = por %p139, %p140
      %p142 = scmp.ne.s32.totalorder %s134, %s137
      %p143 = scmp.eq.s32.totalorder %s22, 0
      %p144 = por %p142, %p143
      %p145 = scmp.ne.s32.totalorder %s134, %s137
      %p146 = scmp.eq.s32.totalorder %s27, 1
      %p147 = por %p145, %p146
      %p148 = scmp.ne.s32.totalorder %s137, %s138
      %p149 = scmp.eq.s32.totalorder %s27, 0
      %p150 = por %p148, %p149
      %p151 = scmp.ne.s32.totalorder %s137, %s138
      %p152 = scmp.eq.s32.totalorder %s28, 1
      %p153 = por %p151, %p152
      %p155 = scmp.ne.s32.totalorder %s138, %s154
      %p156 = scmp.eq.s32.totalorder %s28, 0
      %p157 = por %p155, %p156
      %p158 = scmp.le.s32.totalorder 1, %s22
      %p159 = scmp.lt.s32.totalorder %s22, 3
      %p160 = pnand %p158, %p159
      %p161 = pneg %p160
      // Predicated region
      $region9: #{tpu_custom_call.1} parent=5 // pred_check
        _
      $region10: #{tpu_custom_call.1} parent=5 // pred_check_branch
        %163 = sbr.rel (%p160) target = $region12
      $region11: #{tpu_custom_call.1} parent=5 // pred_region
        %s164 = ssub.s32 %s22, 1
      $region12: #{tpu_custom_call.1} parent=5 // pred_fallthru
        _
      %p165 = scmp.lt.s32.totalorder %s22, 2
      // Predicated region
      $region13: #{tpu_custom_call.1} parent=5 // pred_check
        %p166 = pneg %p165
      $region14: #{tpu_custom_call.1} parent=5 // pred_check_branch
        %168 = sbr.rel (%p166) target = $region16
      $region15: #{tpu_custom_call.1} parent=5 // pred_region
        // Predicated region
        $region17: #{tpu_custom_call.1} parent=15 // pred_check
          %p169 = pneg %p60
        $region18: #{tpu_custom_call.1} parent=15 // pred_check_branch
          %171 = sbr.rel (%p169) target = $region20
        $region19: #{tpu_custom_call.1} parent=15 // pred_region
          %s172 = sand.u32 %s50, 1
          %s173 = scalar_lea.sflag [#allocation3], %s172
          %s174 = sand.u32 %s50, 1
          %s175 = smul.addr %s174, 16
          %s176 = scalar_lea.vmem [#allocation2], %s175
          %s177 = sadd.s32 %s29, %s30
          %p178 = scmp.lt.s32.totalorder %s177, 0
          %s179 = scalar_select %p178, %s177, 0
          %s180 = smul.u32 2, %s179
          %s182 = ssub.s32 256, 256
          %183 = vsyncadd %s173, %s182
          %s184 = smul.addr %s180, 128
          %s185 = scalar_lea.hbm %s0, %s184
          %s186 = sshll.u32 %s176, 4
          %s187 = int_to_ptr.vmem [resolvable:$true] %s186
          %192 = dma.hbm_to_vmem [thread:$0]  %s185, 256, %s187, %s173, 128, 128, 8
        $region20: #{tpu_custom_call.1} parent=15 // pred_fallthru
          _
        // Predicated region
        $region21: #{tpu_custom_call.1} parent=15 // pred_check
          %p193 = pneg %p92
        $region22: #{tpu_custom_call.1} parent=15 // pred_check_branch
          %195 = sbr.rel (%p193) target = $region24
        $region23: #{tpu_custom_call.1} parent=15 // pred_region
          %s196 = sand.u32 %s82, 1
          %s197 = scalar_lea.sflag [#allocation6], %s196
          %s198 = sand.u32 %s82, 1
          %s199 = smul.addr %s198, 16
          %s200 = scalar_lea.vmem [#allocation5], %s199
          %s201 = sadd.s32 %s29, %s30
          %p202 = scmp.lt.s32.totalorder %s201, 0
          %s203 = scalar_select %p202, %s201, 0
          %s204 = smul.u32 2, %s203
          %s206 = ssub.s32 256, 256
          %207 = vsyncadd %s197, %s206
          %s208 = smul.addr %s204, 128
          %s209 = scalar_lea.hbm %s1, %s208
          %s210 = sshll.u32 %s200, 4
          %s211 = int_to_ptr.vmem [resolvable:$true] %s210
          %216 = dma.hbm_to_vmem [thread:$0]  %s209, 256, %s211, %s197, 128, 128, 8
        $region24: #{tpu_custom_call.1} parent=15 // pred_fallthru
          _
      $region16: #{tpu_custom_call.1} parent=5 // pred_fallthru
        _
      %p217 = scmp.le.s32.totalorder 1, %s22
      %p218 = scmp.lt.s32.totalorder %s22, 3
      %p219 = pnand %p217, %p218
      %p220 = pneg %p219
      // Predicated region
      $region25: #{tpu_custom_call.1} parent=5 // pred_check
        _
      $region26: #{tpu_custom_call.1} parent=5 // pred_check_branch
        %222 = sbr.rel (%p219) target = $region28
      $region27: #{tpu_custom_call.1} parent=5 // pred_region
        %s223 = ssub.s32 %s22, 1
        %s224 = sand.u32 %s53, 1
        %s225 = scalar_lea.sflag [#allocation3], %s224
        %s226 = sand.u32 %s53, 1
        %s227 = smul.addr %s226, 16
        %s228 = scalar_lea.vmem [#allocation2], %s227
        // Predicated region
        $region29: #{tpu_custom_call.1} parent=27 // pred_check
          %p229 = pneg %p66
        $region30: #{tpu_custom_call.1} parent=27 // pred_check_branch
          %231 = sbr.rel (%p229) target = $region32
        $region31: #{tpu_custom_call.1} parent=27 // pred_region
          %232 = dma.done %s225, 256
        $region32: #{tpu_custom_call.1} parent=27 // pred_fallthru
          _
        %s233 = sand.u32 %s85, 1
        %s234 = scalar_lea.sflag [#allocation6], %s233
        %s235 = sand.u32 %s85, 1
        %s236 = smul.addr %s235, 16
        %s237 = scalar_lea.vmem [#allocation5], %s236
        // Predicated region
        $region33: #{tpu_custom_call.1} parent=27 // pred_check
          %p238 = pneg %p98
        $region34: #{tpu_custom_call.1} parent=27 // pred_check_branch
          %240 = sbr.rel (%p238) target = $region36
        $region35: #{tpu_custom_call.1} parent=27 // pred_region
          %241 = dma.done %s234, 256
        $region36: #{tpu_custom_call.1} parent=27 // pred_fallthru
          _
        %s242 = sand.u32 %s53, 1
        %s243 = scalar_lea.sflag [#allocation3], %s242
        %s244 = sand.u32 %s53, 1
        %s245 = smul.addr %s244, 16
        %s246 = scalar_lea.vmem [#allocation2], %s245
        %p247 = pneg %p66
        %p248 = pneg %p63
        %s249 = sand.u32 %s85, 1
        %s250 = scalar_lea.sflag [#allocation6], %s249
        %s251 = sand.u32 %s85, 1
        %s252 = smul.addr %s251, 16
        %s253 = scalar_lea.vmem [#allocation5], %s252
        %p254 = pneg %p98
        %p255 = pneg %p95
        %p256 = pneg %p124
        %p257 = pneg %p121
        %s258 = sand.u32 %s111, 1
        %s259 = scalar_lea.sflag [#allocation4], %s258
        %s260 = sand.u32 %s111, 1
        %s261 = scalar_lea.vmem [#allocation7], %s260
        %p262 = pneg %p150
        %p263 = pneg %p147
        %s264 = sand.u32 %s137, 1
        %s265 = scalar_lea.sflag [#allocation9], %s264
        %s266 = sand.u32 %s137, 1
        %s267 = scalar_lea.vmem [#allocation8], %s266
        %s268 = sadd.s32 %s31, %s32
        %p269 = scmp.lt.s32.totalorder %s268, 0
        %s270 = scalar_select %p269, %s268, 0
        %s271 = smul.u32 2, %s270
        %s272 = sadd.s32 %s31, %s32
        %p273 = scmp.lt.s32.totalorder %s272, 0
        %s274 = scalar_select %p273, %s272, 0
        %s275 = smul.u32 2, %s274
        %p276 = scmp.eq.s32.totalorder %s32, 0
        // Predicated region
        $region37: #{tpu_custom_call.1} parent=27 // pred_check
          %p277 = pneg %p276
        $region38: #{tpu_custom_call.1} parent=27 // pred_check_branch
          %279 = sbr.rel (%p277) target = $region40
        $region39: #{tpu_custom_call.1} parent=27 // pred_region
          %280 = vst [vmem:[%s261] sm:$0x1] 0.0
          %281 = vst [vmem:[%s267] sm:$0x1] 0.0
        $region40: #{tpu_custom_call.1} parent=27 // pred_fallthru
          _
        %s282 = sadd.s32 %s31, %s32
        %s283 = smul.u32 %s282, 16
        %v284 = vlaneseq
        %v285 = vshrl.u32 %v284, 7
        %v286 = vadd.s32 %v285, 8
        %v287 = vstv %s283
        %v288 = vadd.s32 %v287, %v285
        %v289 = vadd.s32 %v287, %v286
        %v290 = vlaneseq
        %v291 = vand.u32 %v290, 127
        %v292 = vmul.u32 %v288, 128
        %v293 = vmul.u32 %v289, 128
        %v294 = vadd.s32 %v292, %v291
        %v295 = vadd.s32 %v293, %v291
        %vm296 = vcmp.lt.s32.totalorder %v294, 2048
        %vm297 = vcmp.lt.s32.totalorder %v295, 2048
        %v298 = vld [vmem:[%s228] sm:$0xff]
        %v299 = vld [vmem:[%s228 + $0x8] sm:$0xff]
        %v300 = vsel %vm296, %v298, 0.0
        %v301 = vsel %vm297, %v299, 0.0
        %v302 = vld [vmem:[%s237] sm:$0xff]
        %v303 = vld [vmem:[%s237 + $0x8] sm:$0xff]
        %v304 = vsel %vm296, %v302, 0.0
        %v305 = vsel %vm297, %v303, 0.0
        %v306 = vxor.u32 %v300, 2147483648
        %v307 = vxor.u32 %v301, 2147483648
        %v308 = vmul.f32 %v306, 1.442695
        %v309 = vpow.pop %v308
        %v310 = vmul.f32 %v307, 1.442695
        %v311 = vpow.pop %v310
        %v312 = vadd.f32 %v309, 1.0
        %v313 = vadd.f32 %v311, 1.0
        %v314 = vrcp.pop %v312
        %v315 = vmul.f32 1.0, %v314
        %v316 = vrcp.pop %v313
        %v317 = vmul.f32 1.0, %v316
        %v318 = vsel %vm296, %v315, 0.0
        %v319 = vsel %vm297, %v317, 0.0
        %v320 = vld [vmem:[%s261] sm:$0x1]
        %v321 = vmul.f32 %v318, %v304
        %v322 = vmul.f32 %v319, %v305
        %v323 = vadd.f32 %v321, %v322
        %v324 = vrot.slane %v323, 4
        %v325 = vadd.f32 %v323, %v324
        %v326 = vrot.slane %v325, 2
        %v327 = vadd.f32 %v325, %v326
        %v328 = vrot.slane %v327, 1
        %v329 = vadd.f32 %v327, %v328
        %v330 = vadd.f32 %v320, %v329
        %331 = vst [vmem:[%s261] sm:$0x1] %v330
        %v332 = vld [vmem:[%s267] sm:$0x1]
        %v333 = vadd.f32 %v318, %v304
        %v334 = vadd.f32 %v319, %v305
        %v335 = vadd.f32 %v333, %v334
        %v336 = vrot.slane %v335, 4
        %v337 = vadd.f32 %v335, %v336
        %v338 = vrot.slane %v337, 2
        %v339 = vadd.f32 %v337, %v338
        %v340 = vrot.slane %v339, 1
        %v341 = vadd.f32 %v339, %v340
        %v342 = vadd.f32 %v332, %v341
        %343 = vst [vmem:[%s267] sm:$0x1] %v342
        %s344 = sand.u32 %s111, 1
        %s345 = scalar_lea.sflag [#allocation4], %s344
        %s346 = sand.u32 %s111, 1
        %s347 = scalar_lea.vmem [#allocation7], %s346
        %s348 = sand.u32 %s137, 1
        %s349 = scalar_lea.sflag [#allocation9], %s348
        %s350 = sand.u32 %s137, 1
        %s351 = scalar_lea.vmem [#allocation8], %s350
        // Predicated region
        $region41: #{tpu_custom_call.1} parent=27 // pred_check
          %p352 = pneg %p121
        $region42: #{tpu_custom_call.1} parent=27 // pred_check_branch
          %354 = sbr.rel (%p352) target = $region44
        $region43: #{tpu_custom_call.1} parent=27 // pred_region
          %s356 = ssub.s32 16, 16
          %357 = vsyncadd %s345, %s356
          %s358 = smul.addr %s31, 16
          %s359 = scalar_lea.hbm %s2, %s358
          %s361 = sshll.u32 %s347, 4
          %s362 = int_to_ptr.vmem [resolvable:$true] %s361
          %364 = dma.vmem_to_hbm [thread:$0]  %s362, 16, %s359, %s345
        $region44: #{tpu_custom_call.1} parent=27 // pred_fallthru
          _
        // Predicated region
        $region45: #{tpu_custom_call.1} parent=27 // pred_check
          %p365 = pneg %p147
        $region46: #{tpu_custom_call.1} parent=27 // pred_check_branch
          %367 = sbr.rel (%p365) target = $region48
        $region47: #{tpu_custom_call.1} parent=27 // pred_region
          %s369 = ssub.s32 16, 16
          %370 = vsyncadd %s349, %s369
          %s371 = smul.addr %s31, 16
          %s372 = scalar_lea.hbm %s3, %s371
          %s374 = sshll.u32 %s351, 4
          %s375 = int_to_ptr.vmem [resolvable:$true] %s374
          %377 = dma.vmem_to_hbm [thread:$0]  %s375, 16, %s372, %s349
        $region48: #{tpu_custom_call.1} parent=27 // pred_fallthru
          _
      $region28: #{tpu_custom_call.1} parent=5 // pred_fallthru
        _
      %p378 = scmp.le.s32.totalorder 2, %s22
      // Predicated region
      $region49: #{tpu_custom_call.1} parent=5 // pred_check
        %p379 = pneg %p378
      $region50: #{tpu_custom_call.1} parent=5 // pred_check_branch
        %381 = sbr.rel (%p379) target = $region52
      $region51: #{tpu_custom_call.1} parent=5 // pred_region
        %s382 = ssub.s32 %s22, 2
        // Predicated region
        $region53: #{tpu_custom_call.1} parent=51 // pred_check
          %p383 = pneg %p127
        $region54: #{tpu_custom_call.1} parent=51 // pred_check_branch
          %385 = sbr.rel (%p383) target = $region56
        $region55: #{tpu_custom_call.1} parent=51 // pred_region
          %s386 = sand.u32 %s112, 1
          %s387 = scalar_lea.sflag [#allocation4], %s386
          %s388 = sand.u32 %s112, 1
          %s389 = scalar_lea.vmem [#allocation7], %s388
          %390 = dma.done %s387, 16
        $region56: #{tpu_custom_call.1} parent=51 // pred_fallthru
          _
        // Predicated region
        $region57: #{tpu_custom_call.1} parent=51 // pred_check
          %p391 = pneg %p153
        $region58: #{tpu_custom_call.1} parent=51 // pred_check_branch
          %393 = sbr.rel (%p391) target = $region60
        $region59: #{tpu_custom_call.1} parent=51 // pred_region
          %s394 = sand.u32 %s138, 1
          %s395 = scalar_lea.sflag [#allocation9], %s394
          %s396 = sand.u32 %s138, 1
          %s397 = scalar_lea.vmem [#allocation8], %s396
          %398 = dma.done %s395, 16
        $region60: #{tpu_custom_call.1} parent=51 // pred_fallthru
          _
      $region52: #{tpu_custom_call.1} parent=5 // pred_fallthru
        _
    $region6: #{tpu_custom_call.1} parent=1 // loop_footer
      %s26 = sadd.s32 1, %s22
    $region7: #{tpu_custom_call.1} parent=1 // loop_footer_branch
      %21 = sbr.rel target = $region3
    $region8: #{tpu_custom_call.1} parent=1 // loop_exit
      _
    %399 = vsyncpa [#allocation3], 1
    %s400 = scalar_lea.sflag [#allocation3], 1
    %401 = vsyncpa %s400, 1
    %402 = vsyncpa [#allocation6], 1
    %s403 = scalar_lea.sflag [#allocation6], 1
    %404 = vsyncpa %s403, 1
    %405 = vsyncpa [#allocation4], 1
    %s406 = scalar_lea.sflag [#allocation4], 1
    %407 = vsyncpa %s406, 1
    %408 = vsyncpa [#allocation9], 1
    %s409 = scalar_lea.sflag [#allocation9], 1
    %410 = vsyncpa %s409, 1

</llo_original>
